<compile_context>
chip_gen: v7x
topology: tpu7x:2x2x1
jax: 0.10.0
libtpu: 0.0.40
codegen_flags: <defaults>
</compile_context>

<pallas_src>
import math

import jax
import jax.numpy as jnp
from jax.experimental import pallas as pl
from jax.experimental.pallas import tpu as pltpu


# ---------------------------------------------------------------------------
# PE table construction (matches the torch registered buffer, f32)
# ---------------------------------------------------------------------------
def make_pos_encoding(embedding_dim: int, max_len: int = 5000) -> jnp.ndarray:
    """Sinusoidal positional-encoding table (max_len, embedding_dim), f32."""
    assert embedding_dim % 2 == 0, "embedding_dim must be even (as in the PyTorch module)"
    positions = jnp.arange(0, max_len, dtype=jnp.float32)[:, None]            # (L, 1)
    div_term = jnp.exp(
        jnp.arange(0, embedding_dim, 2, dtype=jnp.float32)
        * (-math.log(10000.0) / embedding_dim)
    )                                                                          # (D/2,)
    sin_part = jnp.sin(positions * div_term)                                   # (L, D/2)
    cos_part = jnp.cos(positions * div_term)                                   # (L, D/2)
    # interleave: even columns sin, odd columns cos
    pe = jnp.stack([sin_part, cos_part], axis=-1).reshape(max_len, embedding_dim)
    return pe.astype(jnp.float32)


def prepare_pe_row(pos_encoding: jnp.ndarray, seq_len: int) -> jnp.ndarray:
    """Slice + flatten the PE table once; cache this like the torch buffer.

    Returns a (1, seq_len*D) f32 row consumed directly by the kernel, so the
    per-forward path has no extra slice/convert XLA launches.
    """
    max_len, d = pos_encoding.shape
    assert seq_len <= max_len, "sequence length exceeds max_len of the PE table"
    return pos_encoding[:seq_len, :].reshape(1, seq_len * d).astype(jnp.float32)


# ---------------------------------------------------------------------------
# Kernel
# ---------------------------------------------------------------------------
def _add_pe_kernel(x_ref, pe_ref, o_ref):
    # x_ref: (TB, W) activation tile; pe_ref: (1, W) f32 PE tile broadcast
    # over the TB sublanes by the VPU.  Add in f32 (matches torch promotion
    # against the f32 buffer), cast once on store.
    o_ref[...] = (x_ref[...].astype(jnp.float32) + pe_ref[...]).astype(o_ref.dtype)


# ---------------------------------------------------------------------------
# Tiling heuristics
# ---------------------------------------------------------------------------
_SUBLANE = {4: 8, 2: 16, 1: 32}   # dtype-native sublane packing multiple


def _pick_target_bytes() -> int:
    """Per-chip x-tile budget: bigger where HBM is faster (amortize step overhead)."""
    try:
        kind = jax.devices()[0].device_kind.lower()
    except Exception:  # pragma: no cover - defensive; fall back to v6e default
        kind = ""
    if "v7" in kind:
        return 6 * 1024 * 1024      # fast HBM, but only 64 MiB VMEM -> ~6 MiB tiles
    if "v5 lite" in kind or "v5e" in kind:
        return 2 * 1024 * 1024      # step overhead already <7% at ~0.8 TB/s
    return 4 * 1024 * 1024          # v6e / default


def _pick_tiles(B: int, row: int, itemsize: int, target_bytes: int):
    """Choose (tb, w): sublane-aligned batch tile, lane-dense divisor-aligned width."""
    sub = _SUBLANE.get(itemsize, 8)

    # --- lane (column) tile width ------------------------------------------
    if row <= 128:
        w = row                                          # full (legal) lane extent
    else:
        w_cap = max(128, (target_bytes // (min(B, sub) * itemsize)) // 128 * 128)
        if row <= w_cap:
            w = row                                      # whole row in one tile
        else:
            # Largest multiple of 128 that divides row (no ragged last column tile).
            w = 0
            cand = (w_cap // 128) * 128
            while cand >= 128:
                if row % cand == 0:
                    w = cand
                    break
                cand -= 128
            if w == 0:
                # No divisor exists (row not a multiple of 128): ragged edge tile,
                # still correct (padded OOB reads, dropped OOB writes).
                w = (w_cap // 128) * 128

    # --- sublane (batch) tile height ---------------------------------------
    tb_max = max(1, target_bytes // (w * itemsize))
    if B <= tb_max:
        tb = B                                           # full batch dim (always legal)
    else:
        tb = max(sub, (tb_max // sub) * sub)             # dtype-native sublane multiple
    return tb, w


# ---------------------------------------------------------------------------
# Forward wrapper
# ---------------------------------------------------------------------------
def positional_encoding_forward(
    x: jnp.ndarray,
    pe_row: jnp.ndarray,
    *,
    target_bytes: int | None = None,
    donate_x: bool = False,
) -> jnp.ndarray:
    """x: (B, S, D); pe_row: (1, S*D) f32 from prepare_pe_row(). Returns x + pe."""
    B, S, D = x.shape
    row = S * D
    assert pe_row.shape == (1, row), "pe_row must be prepare_pe_row(table, S)"
    assert pe_row.dtype == jnp.float32

    xf = x.reshape(B, row)
    itemsize = jnp.dtype(x.dtype).itemsize
    if target_bytes is None:
        target_bytes = _pick_target_bytes()
    tb, w = _pick_tiles(B, row, itemsize, target_bytes)

    # Batch tiles on the INNER (fastest) grid axis: the PE tile's block index
    # (0, j) is constant across consecutive steps, so Pallas revisits it
    # instead of re-DMA'ing it for every batch tile.
    grid = (pl.cdiv(row, w), pl.cdiv(B, tb))

    # Explicit VMEM budget: double-buffered x-in + out tiles + PE tile, plus headroom.
    vmem_needed = 2 * (2 * tb * w * itemsize) + 2 * (w * 4)
    vmem_limit = int(max(32 * 1024 * 1024, vmem_needed + 8 * 1024 * 1024))

    out = pl.pallas_call(
        _add_pe_kernel,
        out_shape=jax.ShapeDtypeStruct((B, row), x.dtype),
        grid_spec=pltpu.PrefetchScalarGridSpec(
            num_scalar_prefetch=0,
            grid=grid,
            in_specs=[
                pl.BlockSpec((tb, w), lambda j, i: (i, j)),   # activation tile
                pl.BlockSpec((1, w), lambda j, i: (0, j)),    # shared PE tile (revisited)
            ],
            out_specs=pl.BlockSpec((tb, w), lambda j, i: (i, j)),
        ),
        compiler_params=pltpu.CompilerParams(
            dimension_semantics=("parallel", "parallel"),     # shardable across TCs (v7x)
            vmem_limit_bytes=vmem_limit,
        ),
        # Optional in-place style residual add: output reuses x's HBM buffer when
        # the caller donates x at the jit boundary.
        input_output_aliases=({0: 0} if donate_x else {}),
    )(xf, pe_row)

    return out.reshape(B, S, D)


# ---------------------------------------------------------------------------
# Demo / self-check
# ---------------------------------------------------------------------------
if __name__ == "__main__":
    # Small shapes consistent with the module: batch=2, seq=8, embedding_dim=32.
    B, S, D = 2, 8, 32
    max_len = 64

    key = jax.random.PRNGKey(0)
    x = jax.random.normal(key, (B, S, D), dtype=jnp.float32)

    pe_table = make_pos_encoding(D, max_len=max_len)
    pe_row = prepare_pe_row(pe_table, S)   # cached once, like the registered buffer

    out = positional_encoding_forward(x, pe_row)
    out = jax.block_until_ready(out)

    # Reference check (plain JAX), mirroring the PyTorch forward exactly.
    ref = x + pe_table[None, :S, :]
    assert out.shape == (B, S, D)
    assert jnp.allclose(out, ref, atol=1e-6), "mismatch vs reference"

    print("KERNEL_OK")
</pallas_src>

<mosaic_0001>
module attributes {stable_mosaic.version = 11 : i64} {
  func.func @_add_pe_kernel(%arg0: i32, %arg1: i32, %arg2: memref<2x256xf32, #tpu.memory_space<vmem>>, %arg3: memref<1x256xf32, #tpu.memory_space<vmem>>, %arg4: memref<2x256xf32, #tpu.memory_space<vmem>>) attributes {dimension_semantics = [#tpu.dimension_semantics<parallel>, #tpu.dimension_semantics<parallel>], iteration_bounds = array<i64: 1, 1>, scalar_prefetch = 0 : i64, scratch_operands = 0 : i64, tpu.core_type = #tpu.core_type<tc>, window_params = [{transform_indices = @transform_0, window_bounds = array<i64: 2, 256>}, {transform_indices = @transform_1, window_bounds = array<i64: 1, 256>}, {transform_indices = @transform_2, window_bounds = array<i64: 2, 256>}]} {
    %c0 = arith.constant 0 : index
    %c0_0 = arith.constant 0 : index
    %0 = vector.load %arg2[%c0, %c0_0] : memref<2x256xf32, #tpu.memory_space<vmem>>, vector<2x256xf32>
    %c0_1 = arith.constant 0 : index
    %c0_2 = arith.constant 0 : index
    %1 = vector.load %arg3[%c0_1, %c0_2] : memref<1x256xf32, #tpu.memory_space<vmem>>, vector<1x256xf32>
    %2 = vector.broadcast %1 : vector<1x256xf32> to vector<2x256xf32>
    %3 = arith.addf %0, %2 : vector<2x256xf32>
    %c0_3 = arith.constant 0 : index
    %c0_4 = arith.constant 0 : index
    %4 = vector.load %arg4[%c0_3, %c0_4] : memref<2x256xf32, #tpu.memory_space<vmem>>, vector<2x256xf32>
    tpu.vector_store %arg4[%c0_3, %c0_4], %3 {strides = array<i32>} : memref<2x256xf32, #tpu.memory_space<vmem>>, vector<2x256xf32>,
    return
  }
  func.func @transform_0(%arg0: i32, %arg1: i32) -> (i32, i32) {
    %c0_i32 = arith.constant 0 : i32
    return %arg1, %arg0 : i32, i32
  }
  func.func @transform_1(%arg0: i32, %arg1: i32) -> (i32, i32) {
    %c0_i32 = arith.constant 0 : i32
    %c0_i32_0 = arith.constant 0 : i32
    return %c0_i32, %arg0 : i32, i32
  }
  func.func @transform_2(%arg0: i32, %arg1: i32) -> (i32, i32) {
    %c0_i32 = arith.constant 0 : i32
    return %arg1, %arg0 : i32, i32
  }
}

</mosaic_0001>

<llo_original>
// kernel: tpu_custom_call.1
$region0: #{tpu_custom_call.1}
  #allocation0 [shape = 'u32[]', space=smem, size = 0x4, offset = 0x4, fixed_abs, tag = 'smem constant byte address 0x4 - core index']
  #allocation1 [shape = 'u32[144,128]{1,0:T(1,128)}', space=vmem, size = 0x12000, scoped, tag = 'internal scratch']
  %s0 = inlined_call_operand.hbm [shape: f32[2,256], index: 0, kind: input, shape index: {}]
  %s1 = inlined_call_operand.vmem [shape: f32[1,256], index: 1, kind: input, shape index: {}]
  %s2 = inlined_call_operand.hbm [shape: f32[2,256], index: 2, kind: output, shape index: {}]
  %s3 = sld [smem:[#allocation0]]
  $region22: #{tpu_custom_call.1} parent=0
    _
  %s5 = ssub.s32 1, %s3
  %s6 = scalar_select 0, %s5, %s3
  $region1: #{tpu_custom_call.1} parent=0
    #allocation2 [shape = 'u8[2048]{0}', space=vmem, size = 0x800, scoped, tag = 'input window, operand 0, single buffered']
    #allocation3 [shape = 's32[1]{0}', space=sflag, size = 0x4, scoped, tag = 'scoped memory for tpu_custom_call.1']
    #allocation4 [shape = 's32[1]{0}', space=sflag, size = 0x4, scoped, tag = 'scoped memory for tpu_custom_call.1']
    #allocation5 [shape = 'u8[2048]{0}', space=vmem, size = 0x800, scoped, tag = 'output window, operand 0, single buffered']
    %7 = vsyncpa [#allocation3], 0
    %8 = vsyncpa [#allocation4], 0
    // Predicated region
    $region2: #{tpu_custom_call.1} parent=1 // pred_check
      _
    $region3: #{tpu_custom_call.1} parent=1 // pred_check_branch
      %10 = sbr.rel (0) target = $region5
    $region4: #{tpu_custom_call.1} parent=1 // pred_region
      %s12 = ssub.s32 64, 64
      %13 = vsyncadd [#allocation3], %s12
      %s15 = sshll.u32 [#allocation2], 4
      %s16 = int_to_ptr.vmem [resolvable:$true] %s15
      %18 = dma.hbm_to_vmem [thread:$0]  %s0, 64, %s16, [#allocation3]
    $region5: #{tpu_custom_call.1} parent=1 // pred_fallthru
      _
    // Predicated region
    $region6: #{tpu_custom_call.1} parent=1 // pred_check
      _
    $region7: #{tpu_custom_call.1} parent=1 // pred_check_branch
      %20 = sbr.rel (0) target = $region9
    $region8: #{tpu_custom_call.1} parent=1 // pred_region
      _
    $region9: #{tpu_custom_call.1} parent=1 // pred_fallthru
      _
    // Predicated region
    $region10: #{tpu_custom_call.1} parent=1 // pred_check
      _
    $region11: #{tpu_custom_call.1} parent=1 // pred_check_branch
      %22 = sbr.rel (0) target = $region13
    $region12: #{tpu_custom_call.1} parent=1 // pred_region
      %23 = dma.done [#allocation3], 64
    $region13: #{tpu_custom_call.1} parent=1 // pred_fallthru
      _
    %v24 = vld [vmem:[#allocation2] sm:$0xf]
    %v25 = vld [vmem:[%s1] sm:$0x3]
    %v27 = vlaneseq
    %v28 = vshrl.u32 %v27, 7
    %v29 = vsub.s32 0, %v28
    %v30 = vrot.slane %v25, %v29
    %v31 = vlaneseq
    %v32 = vshrl.u32 %v31, 7
    %v33 = vsub.s32 1, %v32
    %v34 = vrot.slane %v25, %v33
    %v35 = vcombine.low %v30, %v34
    %v37 = vunpack.c.l.s4 1983009808
    %v38 = vunpack.c.0.s8 %v37
    %v39 = vlaneseq
    %v40 = vshrl.u32 %v39, 7
    %v41 = vsub.s32 %v38, %v40
    %v42 = vrot.slane %v35, %v41
    %v44 = vadd.f32 %v24, %v42
    %45 = vst [vmem:[#allocation5] sm:$0xf] %v44
    // Predicated region
    $region14: #{tpu_custom_call.1} parent=1 // pred_check
      _
    $region15: #{tpu_custom_call.1} parent=1 // pred_check_branch
      %47 = sbr.rel (0) target = $region17
    $region16: #{tpu_custom_call.1} parent=1 // pred_region
      %s49 = ssub.s32 64, 64
      %50 = vsyncadd [#allocation4], %s49
      %s52 = sshll.u32 [#allocation5], 4
      %s53 = int_to_ptr.vmem [resolvable:$true] %s52
      %55 = dma.vmem_to_hbm [thread:$0]  %s53, 64, %s2, [#allocation4]
    $region17: #{tpu_custom_call.1} parent=1 // pred_fallthru
      _
    // Predicated region
    $region18: #{tpu_custom_call.1} parent=1 // pred_check
      _
    $region19: #{tpu_custom_call.1} parent=1 // pred_check_branch
      %57 = sbr.rel (0) target = $region21
    $region20: #{tpu_custom_call.1} parent=1 // pred_region
      %58 = dma.done [#allocation4], 64
    $region21: #{tpu_custom_call.1} parent=1 // pred_fallthru
      _
    %59 = vsyncpa [#allocation3], 1
    %60 = vsyncpa [#allocation4], 1

</llo_original>
